<compile_context>
chip_gen: v6e
topology: v6e:2x2x1
jax: 0.10.0
libtpu: 0.0.40
codegen_flags: <defaults>
</compile_context>

<pallas_src>
import functools

import jax
import jax.numpy as jnp
from jax.experimental import pallas as pl
from jax.experimental.pallas import tpu as pltpu


_MXU_DTYPE = jnp.bfloat16


def _round_up(x, m):
    return ((x + m - 1) // m) * m


def _cdiv(a, b):
    return (a + b - 1) // b


def _tpu_defaults():
    """Trace-time per-generation defaults: (vmem_capacity_bytes, block_m)."""
    vmem_cap = 64 * 1024 * 1024          # conservative fallback = v7x floor
    block_m = 256                        # good default for v6e / v7x
    try:
        vmem_cap = int(pltpu.get_tpu_info().vmem_capacity_bytes)
    except Exception:
        pass
    try:
        kind = jax.devices()[0].device_kind.lower()
        if "v5e" in kind or "v5 lite" in kind or "v5litepod" in kind:
            block_m = 128                # v5e MXU is 4x128x128: M=128 fills it
    except Exception:
        pass
    return vmem_cap, block_m


def mlp_kernel(x_ref, w1_ref, b1_ref, w2_ref, b2_ref, o_ref, *, h_chunk, n_chunks):
    # In-VMEM cast of the f32 batch tile to bf16 (free under the MXU slot);
    # avoids a separate wrapper-side cast pass over x in HBM.
    x = x_ref[...].astype(_MXU_DTYPE)
    # Start from the broadcast second bias so the chunk loop is a pure accumulate.
    y = jnp.zeros(o_ref.shape, jnp.float32) + b2_ref[...]
    # Chunk the hidden dim so the live f32 intermediate stays bounded at
    # (tm x h_chunk x 4 B) instead of (tm x hidden x 4 B). Static slices only.
    for c in range(n_chunks):
        sl = slice(c * h_chunk, (c + 1) * h_chunk)
        h = jnp.dot(x, w1_ref[:, sl], preferred_element_type=jnp.float32)
        h = jnp.maximum(h + b1_ref[:, sl], 0.0)           # bias + ReLU in f32 (VPU)
        y = y + jnp.dot(h.astype(_MXU_DTYPE), w2_ref[sl, :],
                        preferred_element_type=jnp.float32)
    o_ref[...] = y.astype(o_ref.dtype)


@functools.partial(jax.jit, static_argnames=("block_m",))
def mlp_forward(x, w1_t, b1, w2_t, b2, *, block_m=None):
    """relu(x @ w1_t + b1) @ w2_t + b2.

    x:    (B, inp)       float32
    w1_t: (inp, hidden)  weight already transposed to (in, out) layout (one-time)
    b1:   (hidden,)
    w2_t: (hidden, out)
    b2:   (out,)
    Returns (B, out) in x.dtype.
    """
    B, inp = x.shape
    hidden = w1_t.shape[1]
    out = w2_t.shape[1]
    out_dtype = x.dtype

    vmem_cap, default_bm = _tpu_defaults()
    if block_m is None:
        block_m = default_bm
    # Leave ~16 MiB headroom for compiler-internal scratch / semaphores:
    # ~48 MiB usable on v7x (64 MiB), ~112 MiB on v5e/v6e (128 MiB).
    usable_vmem = max(vmem_cap - 16 * 1024 * 1024, 24 * 1024 * 1024)

    # Batch tiling: aim for >= 4 grid steps (>= 2 per TC on v7x megacore) while
    # keeping a decent MXU M; the grid handles a ragged last tile itself.
    tm = max(8, min(block_m, _round_up(_cdiv(B, 4), 8)))
    grid = (_cdiv(B, tm),)

    # K padding only when inp is not lane-aligned (feeds full MXU K passes).
    inp_p = _round_up(inp, 128) if inp % 128 else inp
    # Lane-dense output (unmasked vst); skipped when already a 128 multiple.
    out_p = _round_up(out, 128) if out % 128 else out
    # Hidden chunking: cap the live f32 intermediate; pad hidden so chunks divide
    # evenly (zero-padded hidden units contribute exactly 0 after ReLU).
    h_chunk = min(_round_up(hidden, 128), 2048)
    hidden_p = _round_up(hidden, h_chunk)
    n_chunks = hidden_p // h_chunk

    x_p = x if inp_p == inp else jnp.pad(x, ((0, 0), (0, inp_p - inp)))
    w1_p = w1_t.astype(_MXU_DTYPE)
    if (inp_p, hidden_p) != (inp, hidden):
        w1_p = jnp.pad(w1_p, ((0, inp_p - inp), (0, hidden_p - hidden)))
    b1_p = b1.reshape(1, hidden).astype(jnp.float32)
    if hidden_p != hidden:
        b1_p = jnp.pad(b1_p, ((0, 0), (0, hidden_p - hidden)))
    w2_p = w2_t.astype(_MXU_DTYPE)
    if (hidden_p, out_p) != (hidden, out):
        w2_p = jnp.pad(w2_p, ((0, hidden_p - hidden), (0, out_p - out)))
    b2_p = b2.reshape(1, out).astype(jnp.float32)
    if out_p != out:
        b2_p = jnp.pad(b2_p, ((0, 0), (0, out_p - out)))

    # --- VMEM budget (weights single-buffered via Buffered(1)) ---
    bf16, f32 = 2, 4
    weight_bytes = (inp_p * hidden_p + hidden_p * out_p) * bf16
    bias_bytes = (hidden_p + out_p) * f32
    x_tile_bytes = 2 * tm * inp_p * x.dtype.itemsize          # double-buffered
    out_tile_bytes = 2 * tm * out_p * jnp.dtype(out_dtype).itemsize
    live_bytes = tm * (inp_p * bf16 + h_chunk * (f32 + bf16) + out_p * f32)
    budget = int(1.25 * (weight_bytes + bias_bytes + x_tile_bytes
                         + out_tile_bytes + live_bytes))
    # TODO(synk): auto-switch to a K/N-tiled variant with a scratch accumulator
    # when weights do not fit; here we assert the residency assumption instead.
    assert weight_bytes + bias_bytes <= usable_vmem, (
        "bf16 weights do not fit VMEM-resident; a K/N-tiled variant is required")
    vmem_limit = int(min(max(budget, 32 * 1024 * 1024), usable_vmem))

    cost = pl.CostEstimate(
        flops=2 * B * (inp_p * hidden_p + hidden_p * out_p),
        transcendentals=0,
        bytes_accessed=int(x_p.size * x_p.dtype.itemsize
                           + (w1_p.size + w2_p.size) * bf16
                           + (b1_p.size + b2_p.size) * f32
                           + B * out_p * jnp.dtype(out_dtype).itemsize),
    )

    kernel = functools.partial(mlp_kernel, h_chunk=h_chunk, n_chunks=n_chunks)
    resident = pl.Buffered(1)   # invariant operands: no double-buffering

    y_pad = pl.pallas_call(
        kernel,
        out_shape=jax.ShapeDtypeStruct((B, out_p), out_dtype),
        grid_spec=pltpu.PrefetchScalarGridSpec(
            num_scalar_prefetch=0,
            grid=grid,
            in_specs=[
                pl.BlockSpec((tm, inp_p), lambda i: (i, 0)),       # x tile (pipelined)
                pl.BlockSpec((inp_p, hidden_p), lambda i: (0, 0),  # W1 (resident)
                             pipeline_mode=resident),
                pl.BlockSpec((1, hidden_p), lambda i: (0, 0),      # b1
                             pipeline_mode=resident),
                pl.BlockSpec((hidden_p, out_p), lambda i: (0, 0),  # W2 (resident)
                             pipeline_mode=resident),
                pl.BlockSpec((1, out_p), lambda i: (0, 0),         # b2
                             pipeline_mode=resident),
            ],
            out_specs=pl.BlockSpec((tm, out_p), lambda i: (i, 0)),
        ),
        compiler_params=pltpu.CompilerParams(
            dimension_semantics=("parallel",),   # shard batch tiles across TCs
            vmem_limit_bytes=vmem_limit,
        ),
        cost_estimate=cost,
    )(x_p, w1_p, b1_p, w2_p, b2_p)

    return y_pad if out_p == out else y_pad[:, :out]


def init_linear_params(key, in_features, out_features):
    # Mirrors PyTorch nn.Linear default init (uniform +/- 1/sqrt(fan_in)).
    kw, kb = jax.random.split(key)
    bound = 1.0 / jnp.sqrt(jnp.float32(in_features))
    w = jax.random.uniform(kw, (out_features, in_features), jnp.float32, -bound, bound)
    b = jax.random.uniform(kb, (out_features,), jnp.float32, -bound, bound)
    return w, b


if __name__ == "__main__":
    # Small shapes consistent with Mlp(inp_size, out_size, hidden_sizes=[128]).
    batch = 8
    inp_size = 32
    hidden = 128
    out_size = 16

    key = jax.random.PRNGKey(0)
    kx, k1, k2 = jax.random.split(key, 3)

    x = jax.random.normal(kx, (batch, inp_size), jnp.float32)
    w1, b1 = init_linear_params(k1, inp_size, hidden)
    w2, b2 = init_linear_params(k2, hidden, out_size)

    # Hoist the PyTorch (out, in) -> (in, out) transpose out of the forward path
    # (would be part of parameter storage in a real model).
    w1_t = jnp.asarray(w1.T)
    w2_t = jnp.asarray(w2.T)

    out = mlp_forward(x, w1_t, b1, w2_t, b2)
    jax.block_until_ready(out)

    # Reference check in plain JAX (same semantics as the PyTorch forward).
    ref = jnp.maximum(x @ w1.T + b1, 0.0) @ w2.T + b2
    assert out.shape == (batch, out_size)
    # bf16 MXU inputs with f32 accumulation vs. an f32 reference -> modest tol.
    assert jnp.allclose(out, ref, atol=5e-2, rtol=5e-2), float(jnp.max(jnp.abs(out - ref)))

    print("KERNEL_OK")
</pallas_src>

<mosaic_0001>
module attributes {stable_mosaic.version = 11 : i64} {
  func.func @mlp_kernel(%arg0: i32, %arg1: memref<8x128xf32, #tpu.memory_space<vmem>>, %arg2: memref<128x128xbf16, #tpu.memory_space<vmem>>, %arg3: memref<1x128xf32, #tpu.memory_space<vmem>>, %arg4: memref<128x128xbf16, #tpu.memory_space<vmem>>, %arg5: memref<1x128xf32, #tpu.memory_space<vmem>>, %arg6: memref<8x128xf32, #tpu.memory_space<vmem>>) attributes {dimension_semantics = [#tpu.dimension_semantics<parallel>], iteration_bounds = array<i64: 1>, scalar_prefetch = 0 : i64, scratch_operands = 0 : i64, tpu.core_type = #tpu.core_type<tc>, window_params = [{transform_indices = @transform_0, window_bounds = array<i64: 8, 128>}, {pipeline_mode = #tpu.pipeline_mode<synchronous>, transform_indices = @transform_1, window_bounds = array<i64: 128, 128>}, {pipeline_mode = #tpu.pipeline_mode<synchronous>, transform_indices = @transform_2, window_bounds = array<i64: 1, 128>}, {pipeline_mode = #tpu.pipeline_mode<synchronous>, transform_indices = @transform_3, window_bounds = array<i64: 128, 128>}, {pipeline_mode = #tpu.pipeline_mode<synchronous>, transform_indices = @transform_4, window_bounds = array<i64: 1, 128>}, {transform_indices = @transform_5, window_bounds = array<i64: 8, 128>}]} {
    %c0 = arith.constant 0 : index
    %c0_0 = arith.constant 0 : index
    %0 = vector.load %arg1[%c0, %c0_0] : memref<8x128xf32, #tpu.memory_space<vmem>>, vector<8x128xf32>
    %1 = arith.truncf %0 : vector<8x128xf32> to vector<8x128xbf16>
    %cst = arith.constant 0.000000e+00 : f32
    %2 = vector.broadcast %cst : f32 to vector<8x128xf32>
    %c0_1 = arith.constant 0 : index
    %c0_2 = arith.constant 0 : index
    %3 = vector.load %arg5[%c0_1, %c0_2] : memref<1x128xf32, #tpu.memory_space<vmem>>, vector<1x128xf32>
    %4 = vector.broadcast %3 : vector<1x128xf32> to vector<8x128xf32>
    %5 = arith.addf %2, %4 : vector<8x128xf32>
    %c0_3 = arith.constant 0 : index
    %c0_4 = arith.constant 0 : index
    %6 = vector.load %arg2[%c0_3, %c0_4] : memref<128x128xbf16, #tpu.memory_space<vmem>>, vector<128x128xbf16>
    %cst_5 = arith.constant dense<0.000000e+00> : vector<8x128xf32>
    %7 = tpu.matmul %1, %6, %cst_5 {dimension_numbers = #tpu.dot_dimension_numbers<[1], [0], [0], [1], [0, 0, 1, 1], [], []>} : vector<8x128xbf16>, vector<128x128xbf16>, vector<8x128xf32> -> vector<8x128xf32>
    %c0_6 = arith.constant 0 : index
    %c0_7 = arith.constant 0 : index
    %8 = vector.load %arg3[%c0_6, %c0_7] : memref<1x128xf32, #tpu.memory_space<vmem>>, vector<1x128xf32>
    %9 = vector.broadcast %8 : vector<1x128xf32> to vector<8x128xf32>
    %10 = arith.addf %7, %9 : vector<8x128xf32>
    %cst_8 = arith.constant 0.000000e+00 : f32
    %11 = vector.broadcast %cst_8 : f32 to vector<8x128xf32>
    %12 = arith.maximumf %10, %11 : vector<8x128xf32>
    %13 = arith.truncf %12 : vector<8x128xf32> to vector<8x128xbf16>
    %c0_9 = arith.constant 0 : index
    %c0_10 = arith.constant 0 : index
    %14 = vector.load %arg4[%c0_9, %c0_10] : memref<128x128xbf16, #tpu.memory_space<vmem>>, vector<128x128xbf16>
    %cst_11 = arith.constant dense<0.000000e+00> : vector<8x128xf32>
    %15 = tpu.matmul %13, %14, %cst_11 {dimension_numbers = #tpu.dot_dimension_numbers<[1], [0], [0], [1], [0, 0, 1, 1], [], []>} : vector<8x128xbf16>, vector<128x128xbf16>, vector<8x128xf32> -> vector<8x128xf32>
    %16 = arith.addf %5, %15 : vector<8x128xf32>
    %c0_12 = arith.constant 0 : index
    %c0_13 = arith.constant 0 : index
    %17 = vector.load %arg6[%c0_12, %c0_13] : memref<8x128xf32, #tpu.memory_space<vmem>>, vector<8x128xf32>
    tpu.vector_store %arg6[%c0_12, %c0_13], %16 {strides = array<i32>} : memref<8x128xf32, #tpu.memory_space<vmem>>, vector<8x128xf32>,
    return
  }
  func.func @transform_0(%arg0: i32) -> (i32, i32) {
    %c0_i32 = arith.constant 0 : i32
    %c0_i32_0 = arith.constant 0 : i32
    return %arg0, %c0_i32 : i32, i32
  }
  func.func @transform_1(%arg0: i32) -> (i32, i32) {
    %c0_i32 = arith.constant 0 : i32
    %c0_i32_0 = arith.constant 0 : i32
    %c0_i32_1 = arith.constant 0 : i32
    return %c0_i32, %c0_i32_0 : i32, i32
  }
  func.func @transform_2(%arg0: i32) -> (i32, i32) {
    %c0_i32 = arith.constant 0 : i32
    %c0_i32_0 = arith.constant 0 : i32
    %c0_i32_1 = arith.constant 0 : i32
    return %c0_i32, %c0_i32_0 : i32, i32
  }
  func.func @transform_3(%arg0: i32) -> (i32, i32) {
    %c0_i32 = arith.constant 0 : i32
    %c0_i32_0 = arith.constant 0 : i32
    %c0_i32_1 = arith.constant 0 : i32
    return %c0_i32, %c0_i32_0 : i32, i32
  }
  func.func @transform_4(%arg0: i32) -> (i32, i32) {
    %c0_i32 = arith.constant 0 : i32
    %c0_i32_0 = arith.constant 0 : i32
    %c0_i32_1 = arith.constant 0 : i32
    return %c0_i32, %c0_i32_0 : i32, i32
  }
  func.func @transform_5(%arg0: i32) -> (i32, i32) {
    %c0_i32 = arith.constant 0 : i32
    %c0_i32_0 = arith.constant 0 : i32
    return %arg0, %c0_i32 : i32, i32
  }
}

</mosaic_0001>

<llo_original>
// kernel: mlp_forward.1
$region0: #{mlp_forward.1}
  #allocation0 [shape = 'u32[]', space=smem, size = 0x4, offset = 0x4, fixed_abs, tag = 'smem constant byte address 0x4 - core index']
  #allocation1 [shape = 'u32[144,128]{1,0:T(1,128)}', space=vmem, size = 0x12000, scoped, tag = 'internal scratch']
  %s0 = inlined_call_operand.vmem [shape: f32[8,128], index: 0, kind: input, shape index: {}]
  %s1 = inlined_call_operand.vmem [shape: bf16[128,128], index: 1, kind: input, shape index: {}]
  %s2 = inlined_call_operand.vmem [shape: f32[1,128], index: 2, kind: input, shape index: {}]
  %s3 = inlined_call_operand.vmem [shape: bf16[128,128], index: 3, kind: input, shape index: {}]
  %s4 = inlined_call_operand.vmem [shape: f32[1,128], index: 4, kind: input, shape index: {}]
  %s5 = inlined_call_operand.hbm [shape: f32[8,128], index: 5, kind: output, shape index: {}]
  %s6 = sld [smem:[#allocation0]]
  $region30: #{mlp_forward.1} parent=0
    _
  %s8 = ssub.s32 1, %s6
  %s9 = scalar_select 0, %s8, %s6
  $region1: #{mlp_forward.1} parent=0
    #allocation2 [shape = 'u8[4096]{0}', space=vmem, size = 0x1000, scoped, tag = 'output window, operand 0, single buffered']
    #allocation3 [shape = 's32[1]{0}', space=sflag, size = 0x4, scoped, tag = 'scoped memory for mlp_forward.1']
    %10 = vsyncpa [#allocation3], 0
    // Predicated region
    $region2: #{mlp_forward.1} parent=1 // pred_check
      _
    $region3: #{mlp_forward.1} parent=1 // pred_check_branch
      %12 = sbr.rel (0) target = $region5
    $region4: #{mlp_forward.1} parent=1 // pred_region
      _
    $region5: #{mlp_forward.1} parent=1 // pred_fallthru
      _
    // Predicated region
    $region6: #{mlp_forward.1} parent=1 // pred_check
      _
    $region7: #{mlp_forward.1} parent=1 // pred_check_branch
      %14 = sbr.rel (0) target = $region9
    $region8: #{mlp_forward.1} parent=1 // pred_region
      _
    $region9: #{mlp_forward.1} parent=1 // pred_fallthru
      _
    // Predicated region
    $region10: #{mlp_forward.1} parent=1 // pred_check
      _
    $region11: #{mlp_forward.1} parent=1 // pred_check_branch
      %16 = sbr.rel (0) target = $region13
    $region12: #{mlp_forward.1} parent=1 // pred_region
      _
    $region13: #{mlp_forward.1} parent=1 // pred_fallthru
      _
    // Predicated region
    $region14: #{mlp_forward.1} parent=1 // pred_check
      _
    $region15: #{mlp_forward.1} parent=1 // pred_check_branch
      %18 = sbr.rel (0) target = $region17
    $region16: #{mlp_forward.1} parent=1 // pred_region
      _
    $region17: #{mlp_forward.1} parent=1 // pred_fallthru
      _
    // Predicated region
    $region18: #{mlp_forward.1} parent=1 // pred_check
      _
    $region19: #{mlp_forward.1} parent=1 // pred_check_branch
      %20 = sbr.rel (0) target = $region21
    $region20: #{mlp_forward.1} parent=1 // pred_region
      _
    $region21: #{mlp_forward.1} parent=1 // pred_fallthru
      _
    %v22 = vld [vmem:[%s0] sm:$0xff]
    %v23 = vpack.c.bf16 %v22, %v22
    %v24 = vld [vmem:[%s4] sm:$0x1]
    %v26 = vlaneseq
    %v27 = vshrl.u32 %v26, 7
    %v28 = vsub.s32 0, %v27
    %v29 = vrot.slane %v24, %v28
    %v31 = vadd.f32 %v29, 0.0
    %v32 = vld [vmem:[%s1] sm:$0xf]
    %v33 = vld [vmem:[%s1 + $0x4] sm:$0xf]
    %v34 = vld [vmem:[%s1 + $0x8] sm:$0xf]
    %v35 = vld [vmem:[%s1 + $0xc] sm:$0xf]
    %v36 = vld [vmem:[%s1 + $0x10] sm:$0xf]
    %v37 = vld [vmem:[%s1 + $0x14] sm:$0xf]
    %v38 = vld [vmem:[%s1 + $0x18] sm:$0xf]
    %v39 = vld [vmem:[%s1 + $0x1c] sm:$0xf]
    %v40 = vld [vmem:[%s1 + $0x20] sm:$0xf]
    %v41 = vld [vmem:[%s1 + $0x24] sm:$0xf]
    %v42 = vld [vmem:[%s1 + $0x28] sm:$0xf]
    %v43 = vld [vmem:[%s1 + $0x2c] sm:$0xf]
    %v44 = vld [vmem:[%s1 + $0x30] sm:$0xf]
    %v45 = vld [vmem:[%s1 + $0x34] sm:$0xf]
    %v46 = vld [vmem:[%s1 + $0x38] sm:$0xf]
    %v47 = vld [vmem:[%s1 + $0x3c] sm:$0xf]
    %v48 = vld [vmem:[%s2] sm:$0x1]
    %v50 = vlaneseq
    %v51 = vshrl.u32 %v50, 7
    %v52 = vsub.s32 0, %v51
    %v53 = vrot.slane %v48, %v52
    %v71 = vunpack.c.l.b16 %v32
    %v72 = vunpack.c.l.b16 %v33
    %v73 = vunpack.c.l.b16 %v34
    %v74 = vunpack.c.l.b16 %v35
    %v75 = vunpack.c.l.b16 %v36
    %v76 = vunpack.c.l.b16 %v37
    %v77 = vunpack.c.l.b16 %v38
    %v78 = vunpack.c.l.b16 %v39
    %v79 = vunpack.c.l.b16 %v40
    %v80 = vunpack.c.l.b16 %v41
    %v81 = vunpack.c.l.b16 %v42
    %v82 = vunpack.c.l.b16 %v43
    %v83 = vunpack.c.l.b16 %v44
    %v84 = vunpack.c.l.b16 %v45
    %v85 = vunpack.c.l.b16 %v46
    %v86 = vunpack.c.l.b16 %v47
    %v87 = vpack.c.b16 %v72, %v71
    %v88 = vpack.c.b16 %v74, %v73
    %v89 = vpack.c.b16 %v76, %v75
    %v90 = vpack.c.b16 %v78, %v77
    %v91 = vpack.c.b16 %v80, %v79
    %v92 = vpack.c.b16 %v82, %v81
    %v93 = vpack.c.b16 %v84, %v83
    %v94 = vpack.c.b16 %v86, %v85
    %103 = vmatprep.subr.bf16.mxu0 0
    %104 = vmatpush1.bf16.msra.mxu0 %v94
    %105 = vmatprep.subr.bf16.mxu0 0
    %106 = vmatpush1.bf16.msra.mxu0 %v93
    %107 = vmatprep.subr.bf16.mxu0 0
    %108 = vmatpush1.bf16.msra.mxu0 %v92
    %109 = vmatprep.subr.bf16.mxu0 0
    %110 = vmatpush1.bf16.msra.mxu0 %v91
    %111 = vmatprep.subr.bf16.mxu0 0
    %112 = vmatpush1.bf16.msra.mxu0 %v90
    %113 = vmatprep.subr.bf16.mxu0 0
    %114 = vmatpush1.bf16.msra.mxu0 %v89
    %115 = vmatprep.subr.bf16.mxu0 0
    %116 = vmatpush1.bf16.msra.mxu0 %v88
    %117 = vmatprep.subr.bf16.mxu0 0
    %118 = vmatpush1.bf16.msra.mxu0 %v87
    %119 = vmatprep.subr.bf16.mxu0 0
    %120 = vmatpush2.bf16.msra.mxu0 0
    %121 = vmatprep.subr.bf16.mxu0 0
    %122 = vmatpush2.bf16.msra.mxu0 0
    %123 = vmatprep.subr.bf16.mxu0 0
    %124 = vmatpush2.bf16.msra.mxu0 0
    %125 = vmatprep.subr.bf16.mxu0 0
    %126 = vmatpush2.bf16.msra.mxu0 0
    %127 = vmatprep.subr.bf16.mxu0 0
    %128 = vmatpush2.bf16.msra.mxu0 0
    %129 = vmatprep.subr.bf16.mxu0 0
    %130 = vmatpush2.bf16.msra.mxu0 0
    %131 = vmatprep.subr.bf16.mxu0 0
    %132 = vmatpush2.bf16.msra.mxu0 0
    %133 = vmatprep.subr.bf16.mxu0 0
    %134 = vmatpush2.bf16.msra.mxu0 0
    %135 = vmatprep.mubr.bf16.mxu0 0
    %136 = vmatmul.mubr.bf16.gmra.mxu0 %v23
    %v137 = vpop.f32.mrf.mxu0
    %v138 = vadd.f32 %v53, %v137
    %v139 = vpop.f32.mrf.mxu0
    %v140 = vpop.f32.mrf.mxu0
    %v141 = vpop.f32.mrf.mxu0
    %142 = vdwg.mxu0
    %v143 = vmax.f32 %v138, 0.0
    %v144 = vpack.c.bf16 %v143, %v143
    %v145 = vld [vmem:[%s3] sm:$0xf]
    %v146 = vld [vmem:[%s3 + $0x4] sm:$0xf]
    %v147 = vld [vmem:[%s3 + $0x8] sm:$0xf]
    %v148 = vld [vmem:[%s3 + $0xc] sm:$0xf]
    %v149 = vld [vmem:[%s3 + $0x10] sm:$0xf]
    %v150 = vld [vmem:[%s3 + $0x14] sm:$0xf]
    %v151 = vld [vmem:[%s3 + $0x18] sm:$0xf]
    %v152 = vld [vmem:[%s3 + $0x1c] sm:$0xf]
    %v153 = vld [vmem:[%s3 + $0x20] sm:$0xf]
    %v154 = vld [vmem:[%s3 + $0x24] sm:$0xf]
    %v155 = vld [vmem:[%s3 + $0x28] sm:$0xf]
    %v156 = vld [vmem:[%s3 + $0x2c] sm:$0xf]
    %v157 = vld [vmem:[%s3 + $0x30] sm:$0xf]
    %v158 = vld [vmem:[%s3 + $0x34] sm:$0xf]
    %v159 = vld [vmem:[%s3 + $0x38] sm:$0xf]
    %v160 = vld [vmem:[%s3 + $0x3c] sm:$0xf]
    %v177 = vunpack.c.l.b16 %v145
    %v178 = vunpack.c.l.b16 %v146
    %v179 = vunpack.c.l.b16 %v147
    %v180 = vunpack.c.l.b16 %v148
    %v181 = vunpack.c.l.b16 %v149
    %v182 = vunpack.c.l.b16 %v150
    %v183 = vunpack.c.l.b16 %v151
    %v184 = vunpack.c.l.b16 %v152
    %v185 = vunpack.c.l.b16 %v153
    %v186 = vunpack.c.l.b16 %v154
    %v187 = vunpack.c.l.b16 %v155
    %v188 = vunpack.c.l.b16 %v156
    %v189 = vunpack.c.l.b16 %v157
    %v190 = vunpack.c.l.b16 %v158
    %v191 = vunpack.c.l.b16 %v159
    %v192 = vunpack.c.l.b16 %v160
    %v193 = vpack.c.b16 %v178, %v177
    %v194 = vpack.c.b16 %v180, %v179
    %v195 = vpack.c.b16 %v182, %v181
    %v196 = vpack.c.b16 %v184, %v183
    %v197 = vpack.c.b16 %v186, %v185
    %v198 = vpack.c.b16 %v188, %v187
    %v199 = vpack.c.b16 %v190, %v189
    %v200 = vpack.c.b16 %v192, %v191
    %209 = vmatprep.subr.bf16.mxu0 0
    %210 = vmatpush1.bf16.msra.mxu0 %v200
    %211 = vmatprep.subr.bf16.mxu0 0
    %212 = vmatpush1.bf16.msra.mxu0 %v199
    %213 = vmatprep.subr.bf16.mxu0 0
    %214 = vmatpush1.bf16.msra.mxu0 %v198
    %215 = vmatprep.subr.bf16.mxu0 0
    %216 = vmatpush1.bf16.msra.mxu0 %v197
    %217 = vmatprep.subr.bf16.mxu0 0
    %218 = vmatpush1.bf16.msra.mxu0 %v196
    %219 = vmatprep.subr.bf16.mxu0 0
    %220 = vmatpush1.bf16.msra.mxu0 %v195
    %221 = vmatprep.subr.bf16.mxu0 0
    %222 = vmatpush1.bf16.msra.mxu0 %v194
    %223 = vmatprep.subr.bf16.mxu0 0
    %224 = vmatpush1.bf16.msra.mxu0 %v193
    %225 = vmatprep.subr.bf16.mxu0 0
    %226 = vmatpush2.bf16.msra.mxu0 0
    %227 = vmatprep.subr.bf16.mxu0 0
    %228 = vmatpush2.bf16.msra.mxu0 0
    %229 = vmatprep.subr.bf16.mxu0 0
    %230 = vmatpush2.bf16.msra.mxu0 0
    %231 = vmatprep.subr.bf16.mxu0 0
    %232 = vmatpush2.bf16.msra.mxu0 0
    %233 = vmatprep.subr.bf16.mxu0 0
    %234 = vmatpush2.bf16.msra.mxu0 0
    %235 = vmatprep.subr.bf16.mxu0 0
    %236 = vmatpush2.bf16.msra.mxu0 0
    %237 = vmatprep.subr.bf16.mxu0 0
    %238 = vmatpush2.bf16.msra.mxu0 0
    %239 = vmatprep.subr.bf16.mxu0 0
    %240 = vmatpush2.bf16.msra.mxu0 0
    %241 = vmatprep.mubr.bf16.mxu0 0
    %242 = vmatmul.mubr.bf16.gmra.mxu0 %v144
    %v243 = vpop.f32.mrf.mxu0
    %v244 = vadd.f32 0.0, %v243
    %v245 = vpop.f32.mrf.mxu0
    %v246 = vpop.f32.mrf.mxu0
    %v247 = vpop.f32.mrf.mxu0
    %248 = vdwg.mxu0
    %v249 = vadd.f32 %v31, %v244
    %250 = vst [vmem:[#allocation2] sm:$0xff] %v249
    // Predicated region
    $region22: #{mlp_forward.1} parent=1 // pred_check
      _
    $region23: #{mlp_forward.1} parent=1 // pred_check_branch
      %252 = sbr.rel (0) target = $region25
    $region24: #{mlp_forward.1} parent=1 // pred_region
      %s254 = ssub.s32 128, 128
      %255 = vsyncadd [#allocation3], %s254
      %s257 = sshll.u32 [#allocation2], 4
      %s258 = int_to_ptr.vmem [resolvable:$true] %s257
      %260 = dma.vmem_to_hbm [thread:$0]  %s258, 128, %s5, [#allocation3]
    $region25: #{mlp_forward.1} parent=1 // pred_fallthru
      _
    // Predicated region
    $region26: #{mlp_forward.1} parent=1 // pred_check
      _
    $region27: #{mlp_forward.1} parent=1 // pred_check_branch
      %262 = sbr.rel (0) target = $region29
    $region28: #{mlp_forward.1} parent=1 // pred_region
      %263 = dma.done [#allocation3], 128
    $region29: #{mlp_forward.1} parent=1 // pred_fallthru
      _
    %264 = vsyncpa [#allocation3], 1

</llo_original>
